<compile_context>
chip_gen: v7x
topology: tpu7x:2x2x1
jax: 0.10.0
libtpu: 0.0.40
codegen_flags: <defaults>
</compile_context>

<pallas_src>
import jax
import jax.numpy as jnp
from jax.experimental import pallas as pl
from jax.experimental.pallas import tpu as pltpu

EPS = 1e-9
LANE = 128


def dice_kernel(x_ref, alpha_ref, o_ref):
    # x_ref: (B, TD) block in VMEM, full batch resident so dim-0 stats are exact.
    xf = x_ref[...].astype(jnp.float32)
    b = xf.shape[0]

    # mean over batch (dim 0)
    mean = jnp.sum(xf, axis=0, keepdims=True) * (1.0 / b)
    diff = xf - mean

    # unbiased variance over batch (torch.var default divides by N-1); centered form
    # (kept centered to avoid E[x^2]-E[x]^2 cancellation).
    inv_nm1 = (1.0 / (b - 1)) if b > 1 else float("nan")   # matches torch's NaN for B==1
    var = jnp.sum(diff * diff, axis=0, keepdims=True) * inv_nm1

    # Fold sigmoid(z) = 0.5*(tanh(z/2)+1) constants into per-column / per-block scalars:
    #   out = x * (k0 + k1 * tanh(diff * rstd_half))
    rstd_half = 0.5 * jax.lax.rsqrt(var + EPS)              # (1, TD)
    alpha = alpha_ref[0]                                    # scalar read from SMEM
    k1 = 0.5 * (1.0 - alpha)
    k0 = alpha + k1
    o_ref[...] = (xf * (k0 + k1 * jnp.tanh(diff * rstd_half))).astype(o_ref.dtype)


def _vmem_capacity_bytes():
    try:
        info = pltpu.get_tpu_info()
        cap = getattr(info, "vmem_capacity_bytes", None)
        if cap:
            return int(cap)
    except Exception:
        pass
    return 64 * 1024 * 1024   # conservative fallback (v7x per-TensorCore VMEM)


def _select_tile_d(B, D, itemsize, vmem_cap):
    """Pick a lane-dense tile width TD (multiple of 128) from the VMEM budget."""
    d_round = pl.cdiv(D, LANE) * LANE
    # Live bytes per block element: double-buffered input + double-buffered output
    # + ~3 full-block f32 temps (xf, diff, product).
    per_elem = 2 * itemsize + 2 * itemsize + 3 * 4
    budget = int(0.75 * vmem_cap)                       # ~48 MiB live ceiling on v7x
    td_vmem = (budget // (per_elem * max(B, 1))) // LANE * LANE
    td = max(LANE, min(d_round, td_vmem))
    # Guarantee >=2 grid steps whenever D allows it so v7x's two TensorCores both run.
    if d_round >= 2 * LANE:
        td = min(td, max(LANE, (d_round // 2) // LANE * LANE))
    return td


def dice(x, alpha):
    """x: (B, D) float array, alpha: scalar parameter (shape (1,) like the module)."""
    B, D = x.shape
    itemsize = jnp.dtype(x.dtype).itemsize
    vmem_cap = _vmem_capacity_bytes()
    TD = _select_tile_d(B, D, itemsize, vmem_cap)
    grid_d = pl.cdiv(D, TD)

    alpha_arr = jnp.asarray(alpha, dtype=jnp.float32).reshape(1)

    # Scoped-VMEM limit sized to the chosen blocks (with headroom), capped near physical.
    per_elem = 2 * itemsize + 2 * itemsize + 3 * 4
    needed = per_elem * B * TD
    vmem_limit = int(min(0.85 * vmem_cap, max(32 * 1024 * 1024, 2 * needed)))

    cost = pl.CostEstimate(
        flops=8 * B * D,
        transcendentals=B * D,
        bytes_accessed=2 * B * D * itemsize,
    )

    out = pl.pallas_call(
        dice_kernel,
        out_shape=jax.ShapeDtypeStruct((B, D), x.dtype),
        grid=(grid_d,),
        in_specs=[
            pl.BlockSpec((B, TD), lambda d: (0, d)),                 # full batch, D-tile
            pl.BlockSpec(memory_space=pltpu.MemorySpace.SMEM),       # alpha scalar in SMEM
        ],
        out_specs=pl.BlockSpec((B, TD), lambda d: (0, d)),
        compiler_params=pltpu.CompilerParams(
            dimension_semantics=("parallel",),                       # megacore on v7x
            vmem_limit_bytes=vmem_limit,
        ),
        cost_estimate=cost,
    )(x, alpha_arr)
    return out


def dice_ref(x, alpha):
    # Pure-JAX reference mirroring the PyTorch forward exactly.
    xf = x.astype(jnp.float32)
    mean = jnp.mean(xf, axis=0)
    var = jnp.var(xf, axis=0, ddof=1)  # unbiased, like torch.var default
    norm_x = (xf - mean) / jnp.sqrt(var + EPS)
    p = jax.nn.sigmoid(norm_x)
    a = jnp.asarray(alpha, dtype=jnp.float32).reshape(())
    return (a * xf * (1.0 - p) + xf * p).astype(x.dtype)


if __name__ == "__main__":
    key = jax.random.PRNGKey(0)
    B, D = 8, 32
    x = jax.random.normal(key, (B, D), dtype=jnp.float32)

    # Parameter init exactly as the module's __init__: alpha = zeros((1,))
    alpha0 = jnp.zeros((1,), dtype=jnp.float32)
    out0 = jax.block_until_ready(dice(x, alpha0))
    ref0 = dice_ref(x, alpha0)
    assert out0.shape == (B, D) and out0.dtype == x.dtype
    assert jnp.allclose(out0, ref0, atol=1e-5, rtol=1e-5), "mismatch vs reference (alpha=0)"

    # Also exercise a non-trivial alpha to check the gating path.
    alpha1 = jnp.full((1,), 0.25, dtype=jnp.float32)
    out1 = jax.block_until_ready(dice(x, alpha1))
    ref1 = dice_ref(x, alpha1)
    assert jnp.allclose(out1, ref1, atol=1e-5, rtol=1e-5), "mismatch vs reference (alpha=0.25)"

    # A ragged-D, wider case to exercise the multi-step grid + masked last tile path.
    B2, D2 = 16, 300
    x2 = jax.random.normal(jax.random.PRNGKey(1), (B2, D2), dtype=jnp.float32)
    out2 = jax.block_until_ready(dice(x2, alpha1))
    ref2 = dice_ref(x2, alpha1)
    assert jnp.allclose(out2, ref2, atol=1e-5, rtol=1e-5), "mismatch vs reference (ragged D)"

    print("KERNEL_OK")
</pallas_src>

<mosaic_0001>
module attributes {stable_mosaic.version = 11 : i64} {
  func.func @dice_kernel(%arg0: i32, %arg1: memref<8x128xf32, #tpu.memory_space<vmem>>, %arg2: memref<1xf32, #tpu.memory_space<smem>>, %arg3: memref<8x128xf32, #tpu.memory_space<vmem>>) attributes {dimension_semantics = [#tpu.dimension_semantics<parallel>], iteration_bounds = array<i64: 1>, scalar_prefetch = 0 : i64, scratch_operands = 0 : i64, tpu.core_type = #tpu.core_type<tc>, window_params = [{transform_indices = @transform_0, window_bounds = array<i64: 8, 128>}, {transform_indices = @transform_1, window_bounds = array<i64: 1>}, {transform_indices = @transform_2, window_bounds = array<i64: 8, 128>}]} {
    %c0 = arith.constant 0 : index
    %c0_0 = arith.constant 0 : index
    %0 = vector.load %arg1[%c0, %c0_0] : memref<8x128xf32, #tpu.memory_space<vmem>>, vector<8x128xf32>
    %cst = arith.constant dense<0.000000e+00> : vector<128xf32>
    %1 = vector.multi_reduction <add>, %0, %cst [0] : vector<8x128xf32> to vector<128xf32>
    %2 = vector.shape_cast %1 : vector<128xf32> to vector<1x128xf32>
    %cst_1 = arith.constant 1.250000e-01 : f32
    %3 = vector.broadcast %cst_1 : f32 to vector<1x128xf32>
    %4 = arith.mulf %2, %3 : vector<1x128xf32>
    %5 = vector.broadcast %4 : vector<1x128xf32> to vector<8x128xf32>
    %6 = arith.subf %0, %5 : vector<8x128xf32>
    %7 = arith.mulf %6, %6 : vector<8x128xf32>
    %cst_2 = arith.constant dense<0.000000e+00> : vector<128xf32>
    %8 = vector.multi_reduction <add>, %7, %cst_2 [0] : vector<8x128xf32> to vector<128xf32>
    %9 = vector.shape_cast %8 : vector<128xf32> to vector<1x128xf32>
    %cst_3 = arith.constant 0.142857149 : f32
    %10 = vector.broadcast %cst_3 : f32 to vector<1x128xf32>
    %11 = arith.mulf %9, %10 : vector<1x128xf32>
    %cst_4 = arith.constant 9.99999971E-10 : f32
    %12 = vector.broadcast %cst_4 : f32 to vector<1x128xf32>
    %13 = arith.addf %11, %12 : vector<1x128xf32>
    %14 = math.rsqrt %13 : vector<1x128xf32>
    %cst_5 = arith.constant 5.000000e-01 : f32
    %15 = vector.broadcast %cst_5 : f32 to vector<1x128xf32>
    %16 = arith.mulf %15, %14 : vector<1x128xf32>
    %c0_6 = arith.constant 0 : index
    %17 = memref.load %arg2[%c0_6] : memref<1xf32, #tpu.memory_space<smem>>
    %cst_7 = arith.constant 1.000000e+00 : f32
    %18 = arith.subf %cst_7, %17 : f32
    %cst_8 = arith.constant 5.000000e-01 : f32
    %19 = arith.mulf %cst_8, %18 : f32
    %20 = arith.addf %17, %19 : f32
    %21 = vector.broadcast %16 : vector<1x128xf32> to vector<8x128xf32>
    %22 = arith.mulf %6, %21 : vector<8x128xf32>
    %23 = math.tanh %22 : vector<8x128xf32>
    %24 = vector.broadcast %19 : f32 to vector<8x128xf32>
    %25 = arith.mulf %24, %23 : vector<8x128xf32>
    %26 = vector.broadcast %20 : f32 to vector<8x128xf32>
    %27 = arith.addf %26, %25 : vector<8x128xf32>
    %28 = arith.mulf %0, %27 : vector<8x128xf32>
    %c0_9 = arith.constant 0 : index
    %c0_10 = arith.constant 0 : index
    %29 = vector.load %arg3[%c0_9, %c0_10] : memref<8x128xf32, #tpu.memory_space<vmem>>, vector<8x128xf32>
    tpu.vector_store %arg3[%c0_9, %c0_10], %28 {strides = array<i32>} : memref<8x128xf32, #tpu.memory_space<vmem>>, vector<8x128xf32>,
    return
  }
  func.func @transform_0(%arg0: i32) -> (i32, i32) {
    %c0_i32 = arith.constant 0 : i32
    %c0_i32_0 = arith.constant 0 : i32
    return %c0_i32, %arg0 : i32, i32
  }
  func.func @transform_1(%arg0: i32) -> i32 {
    %c0_i32 = arith.constant 0 : i32
    %c0_i32_0 = arith.constant 0 : i32
    return %c0_i32 : i32
  }
  func.func @transform_2(%arg0: i32) -> (i32, i32) {
    %c0_i32 = arith.constant 0 : i32
    %c0_i32_0 = arith.constant 0 : i32
    return %c0_i32, %arg0 : i32, i32
  }
}

</mosaic_0001>

<llo_original>
// kernel: tpu_custom_call.1
$region0: #{tpu_custom_call.1}
  #allocation0 [shape = 'u32[]', space=smem, size = 0x4, offset = 0x4, fixed_abs, tag = 'smem constant byte address 0x4 - core index']
  #allocation1 [shape = 'u32[144,128]{1,0:T(1,128)}', space=vmem, size = 0x12000, scoped, tag = 'internal scratch']
  #allocation2 [shape = 'f32[1]{0:T(128)S(6)}', space=smem, size = 0x200, scoped, tag = 'scoped memory for tpu_custom_call.1']
  %s0 = inlined_call_operand.hbm [shape: f32[8,32], index: 0, kind: input, shape index: {}]
  %s1 = inlined_call_operand.<no memory space> [shape: f32[1], index: 1, kind: input, shape index: {}]
  %s2 = inlined_call_operand.hbm [shape: f32[8,32], index: 2, kind: output, shape index: {}]
  %s3 = sld [smem:[#allocation0]]
  $region22: #{tpu_custom_call.1} parent=0
    _
  %s5 = ssub.s32 1, %s3
  %s6 = scalar_select 0, %s5, %s3
  %7 = sst [smem:[#allocation2]] %s1
  $region1: #{tpu_custom_call.1} parent=0
    #allocation3 [shape = 'u8[4096]{0}', space=vmem, size = 0x1000, scoped, tag = 'input window, operand 0, single buffered']
    #allocation4 [shape = 's32[1]{0}', space=sflag, size = 0x4, scoped, tag = 'scoped memory for tpu_custom_call.1']
    #allocation5 [shape = 's32[1]{0}', space=sflag, size = 0x4, scoped, tag = 'scoped memory for tpu_custom_call.1']
    #allocation6 [shape = 'u8[4096]{0}', space=vmem, size = 0x1000, scoped, tag = 'output window, operand 0, single buffered']
    %8 = vsyncpa [#allocation4], 0
    %9 = vsyncpa [#allocation5], 0
    // Predicated region
    $region2: #{tpu_custom_call.1} parent=1 // pred_check
      _
    $region3: #{tpu_custom_call.1} parent=1 // pred_check_branch
      %11 = sbr.rel (0) target = $region5
    $region4: #{tpu_custom_call.1} parent=1 // pred_region
      %s13 = ssub.s32 128, 128
      %14 = vsyncadd [#allocation4], %s13
      %s16 = sshll.u32 [#allocation3], 4
      %s17 = int_to_ptr.vmem [resolvable:$true] %s16
      %19 = dma.hbm_to_vmem [thread:$0]  %s0, 128, %s17, [#allocation4]
    $region5: #{tpu_custom_call.1} parent=1 // pred_fallthru
      _
    // Predicated region
    $region6: #{tpu_custom_call.1} parent=1 // pred_check
      _
    $region7: #{tpu_custom_call.1} parent=1 // pred_check_branch
      %21 = sbr.rel (0) target = $region9
    $region8: #{tpu_custom_call.1} parent=1 // pred_region
      _
    $region9: #{tpu_custom_call.1} parent=1 // pred_fallthru
      _
    // Predicated region
    $region10: #{tpu_custom_call.1} parent=1 // pred_check
      _
    $region11: #{tpu_custom_call.1} parent=1 // pred_check_branch
      %23 = sbr.rel (0) target = $region13
    $region12: #{tpu_custom_call.1} parent=1 // pred_region
      %24 = dma.done [#allocation4], 128
    $region13: #{tpu_custom_call.1} parent=1 // pred_fallthru
      _
    %v25 = vld [vmem:[#allocation3] sm:$0xff]
    %v26 = vrot.slane %v25, 4
    %v27 = vadd.f32 %v25, %v26
    %v28 = vrot.slane %v27, 2
    %v29 = vadd.f32 %v27, %v28
    %v30 = vrot.slane %v29, 1
    %v31 = vadd.f32 %v29, %v30
    %v32 = vmul.f32 %v31, 0.125
    %v33 = vsub.f32 %v25, %v32
    %v34 = vmul.f32 %v33, %v33
    %v35 = vrot.slane %v34, 4
    %v36 = vadd.f32 %v34, %v35
    %v37 = vrot.slane %v36, 2
    %v38 = vadd.f32 %v36, %v37
    %v39 = vrot.slane %v38, 1
    %v40 = vadd.f32 %v38, %v39
    %v41 = vmul.f32 %v40, 0.14285715
    %v42 = vadd.f32 %v41, 1e-09
    %v43 = vrsqrt.pop %v42
    %v44 = vmul.f32 %v43, 0.5
    %s45 = sld [smem:[#allocation2]]
    %s46 = ssub.f32 1.0, %s45
    %s47 = smul.f32 %s46, 0.5
    %s48 = sadd.f32 %s45, %s47
    %v49 = vmul.f32 %v33, %v44
    %v50 = vtanh.pop %v49
    %v51 = vstv %s47
    %v52 = vmul.f32 %v51, %v50
    %v53 = vstv %s48
    %v54 = vadd.f32 %v53, %v52
    %v55 = vmul.f32 %v25, %v54
    %56 = vst [vmem:[#allocation6] sm:$0xff] %v55
    // Predicated region
    $region14: #{tpu_custom_call.1} parent=1 // pred_check
      _
    $region15: #{tpu_custom_call.1} parent=1 // pred_check_branch
      %58 = sbr.rel (0) target = $region17
    $region16: #{tpu_custom_call.1} parent=1 // pred_region
      %s60 = ssub.s32 128, 128
      %61 = vsyncadd [#allocation5], %s60
      %s63 = sshll.u32 [#allocation6], 4
      %s64 = int_to_ptr.vmem [resolvable:$true] %s63
      %66 = dma.vmem_to_hbm [thread:$0]  %s64, 128, %s2, [#allocation5]
    $region17: #{tpu_custom_call.1} parent=1 // pred_fallthru
      _
    // Predicated region
    $region18: #{tpu_custom_call.1} parent=1 // pred_check
      _
    $region19: #{tpu_custom_call.1} parent=1 // pred_check_branch
      %68 = sbr.rel (0) target = $region21
    $region20: #{tpu_custom_call.1} parent=1 // pred_region
      %69 = dma.done [#allocation5], 128
    $region21: #{tpu_custom_call.1} parent=1 // pred_fallthru
      _
    %70 = vsyncpa [#allocation4], 1
    %71 = vsyncpa [#allocation5], 1

</llo_original>
